<compile_context>
chip_gen: v7x
topology: tpu7x:2x2x1
jax: 0.10.0
libtpu: 0.0.40
codegen_flags: <defaults>
</compile_context>

<pallas_src>
import jax
import jax.numpy as jnp
import numpy as np
from jax.experimental import pallas as pl
from jax.experimental.pallas import tpu as pltpu

LEAKY_SLOPE = 0.01  # torch.nn.functional.leaky_relu default negative_slope
LANE = 128
SUBLANE = 8


def _round_up(x, m):
    return (x + m - 1) // m * m


def _leaky_relu(x):
    # mul + max (2 VPU ops) instead of where's cmp + select + mul.
    return jnp.maximum(x, LEAKY_SLOPE * x)


def _make_actor_kernel(s, a, h1_pad, h2_pad, a_pad, compute_dtype):
    """Kernel closure over static layer widths / packed-slab column offsets."""
    c1 = h1_pad
    c2 = h1_pad + h2_pad
    c3 = h1_pad + h2_pad + a_pad

    def actor_kernel(x_ref, w_ref, b_ref, out_ref):
        # x_ref: (tb, s) f32   w_ref: (k_max, c3) bf16   b_ref: (1, c3) f32
        # out_ref: (tb, a) f32
        x = x_ref[...].astype(compute_dtype)

        # Static, tile-aligned views into the packed slabs.
        w1 = w_ref[0:s, 0:c1]            # (s, h1_pad)
        w2 = w_ref[0:h1_pad, c1:c2]      # (h1_pad, h2_pad)
        w3 = w_ref[0:h2_pad, c2:c3]      # (h2_pad, a_pad)  (cols >= a are zero)
        b1 = b_ref[:, 0:c1]
        b2 = b_ref[:, c1:c2]
        b3 = b_ref[:, c2:c3]

        h1 = jnp.dot(x, w1, preferred_element_type=jnp.float32) + b1
        h1 = _leaky_relu(h1)

        h2 = jnp.dot(h1.astype(compute_dtype), w2,
                     preferred_element_type=jnp.float32) + b2
        h2 = _leaky_relu(h2)

        h3 = jnp.dot(h2.astype(compute_dtype), w3,
                     preferred_element_type=jnp.float32) + b3
        # Store only the live action columns (output array is unpadded).
        out_ref[...] = jnp.tanh(h3[:, :a]).astype(out_ref.dtype)

    return actor_kernel


def pack_actor_params(params, compute_dtype=jnp.bfloat16):
    """Pack the 6 params into one weight slab (k_max, H1p+H2p+Ap) in
    `compute_dtype` and one f32 bias slab (1, H1p+H2p+Ap).  Output column
    blocks are padded to 128 lanes (zeros) so in-kernel slab slices stay
    lane-aligned; the state/K dimension is NOT padded.  Do this once and reuse
    across calls (weights stay staged on device)."""
    w1, b1 = params["w1"], params["b1"]
    w2, b2 = params["w2"], params["b2"]
    w3, b3 = params["w3"], params["b3"]

    s, h1 = w1.shape
    _, h2 = w2.shape
    _, a = w3.shape
    h1_pad, h2_pad, a_pad = (_round_up(d, LANE) for d in (h1, h2, a))
    k_max = _round_up(max(s, h1, h2), 2 * SUBLANE)  # bf16 sublane-pack aligned
    cols = h1_pad + h2_pad + a_pad

    w_slab = jnp.zeros((k_max, cols), jnp.float32)
    w_slab = w_slab.at[:s, 0:h1].set(w1)
    w_slab = w_slab.at[:h1, h1_pad:h1_pad + h2].set(w2)
    w_slab = w_slab.at[:h2, h1_pad + h2_pad:h1_pad + h2_pad + a].set(w3)
    w_slab = w_slab.astype(compute_dtype)

    b_slab = jnp.zeros((1, cols), jnp.float32)
    b_slab = b_slab.at[:, 0:h1].set(b1.reshape(1, -1))
    b_slab = b_slab.at[:, h1_pad:h1_pad + h2].set(b2.reshape(1, -1))
    b_slab = b_slab.at[:, h1_pad + h2_pad:h1_pad + h2_pad + a].set(b3.reshape(1, -1))

    dims = dict(state=s, action=a, h1_pad=h1_pad, h2_pad=h2_pad, a_pad=a_pad,
                k_max=k_max, cols=cols)
    return w_slab, b_slab, dims


def _pick_batch_tile(B):
    """Fixed tile buckets: bounded set of kernel shapes, >=2 grid steps for
    medium/large batches (keeps both v7x TensorCores busy), big enough tiles
    to amortize per-step pipeline overhead.  Working set stays < ~2 MiB even
    at tb=1024, so default scoped VMEM is fine on v5e/v6e/v7x."""
    if B <= 256:
        return B          # single exact block; tiny batches are latency-bound anyway
    if B <= 1024:
        return 256
    if B <= 4096:
        return 512
    return 1024


def actor_forward(x, w_slab, b_slab, dims, compute_dtype=jnp.bfloat16):
    """x: [B, state_size] float32. Returns [B, action_size] float32."""
    B, s = x.shape
    assert s == dims["state"]
    a = dims["action"]
    k_max, cols = dims["k_max"], dims["cols"]

    tb = _pick_batch_tile(B)
    grid = (pl.cdiv(B, tb),)   # ragged final block: OOB reads stay in OOB rows,
                               # OOB stores are masked -> no wrapper padding.

    kernel = _make_actor_kernel(s, a, dims["h1_pad"], dims["h2_pad"],
                                dims["a_pad"], compute_dtype)

    out = pl.pallas_call(
        kernel,
        out_shape=jax.ShapeDtypeStruct((B, a), jnp.float32),
        grid=grid,
        in_specs=[
            pl.BlockSpec((tb, s), lambda i: (i, 0)),       # x tile (unpadded features)
            pl.BlockSpec((k_max, cols), lambda i: (0, 0)),  # packed weights (resident)
            pl.BlockSpec((1, cols), lambda i: (0, 0)),      # packed biases (resident)
        ],
        out_specs=pl.BlockSpec((tb, a), lambda i: (i, 0)),  # unpadded output
        compiler_params=pltpu.CompilerParams(
            dimension_semantics=("parallel",)),
    )(x, w_slab, b_slab)

    return out


def init_actor_params(key, state_size, action_size,
                      hidden_in_dim=128, hidden_out_dim=128):
    """Deterministic init mirroring the PyTorch module's reset_parameters():
       fc1/fc2 weights ~ U(-1/sqrt(out_features), ...), fc3 weights ~ U(-3e-3, 3e-3);
       biases use the default nn.Linear init U(-1/sqrt(in_features), ...).
       Weights stored transposed (in, out)."""
    ks = jax.random.split(key, 6)

    def uni(k, shape, lim):
        return jax.random.uniform(k, shape, jnp.float32, -lim, lim)

    lim1 = 1.0 / np.sqrt(hidden_in_dim)
    lim2 = 1.0 / np.sqrt(hidden_out_dim)

    return {
        "w1": uni(ks[0], (state_size, hidden_in_dim), lim1),
        "b1": uni(ks[1], (1, hidden_in_dim), 1.0 / np.sqrt(state_size)),
        "w2": uni(ks[2], (hidden_in_dim, hidden_out_dim), lim2),
        "b2": uni(ks[3], (1, hidden_out_dim), 1.0 / np.sqrt(hidden_in_dim)),
        "w3": uni(ks[4], (hidden_out_dim, action_size), 0.003),
        "b3": uni(ks[5], (1, action_size), 1.0 / np.sqrt(hidden_out_dim)),
    }


def actor_reference(x, p):
    """Pure-JAX f32 reference for correctness check."""
    h1_pre = x @ p["w1"] + p["b1"]
    h1 = jnp.where(h1_pre > 0, h1_pre, LEAKY_SLOPE * h1_pre)
    h2_pre = h1 @ p["w2"] + p["b2"]
    h2 = jnp.where(h2_pre > 0, h2_pre, LEAKY_SLOPE * h2_pre)
    return jnp.tanh(h2 @ p["w3"] + p["b3"])


if __name__ == "__main__":
    key = jax.random.PRNGKey(0)
    k_params, k_x1, k_x2, k_x3 = jax.random.split(key, 4)

    state_size = 32
    action_size = 8
    hidden_in_dim = 128
    hidden_out_dim = 128

    params = init_actor_params(k_params, state_size, action_size,
                               hidden_in_dim, hidden_out_dim)
    w_slab, b_slab, dims = pack_actor_params(params, compute_dtype=jnp.bfloat16)

    # bf16 matmul operands, f32 accumulation/epilogue -> ~5e-3 abs error budget.
    ATOL = 5e-3

    # 1) Small-batch path (single exact block, tb == B).
    x_small = jax.random.normal(k_x1, (8, state_size), jnp.float32)
    out_small = jax.block_until_ready(actor_forward(x_small, w_slab, b_slab, dims))
    np.testing.assert_allclose(np.asarray(out_small),
                               np.asarray(actor_reference(x_small, params)),
                               rtol=0, atol=ATOL)

    # 2) Ragged grid (tb=256, grid=2, last block partially out of bounds).
    x_rag = jax.random.normal(k_x2, (300, state_size), jnp.float32)
    out_rag = jax.block_until_ready(actor_forward(x_rag, w_slab, b_slab, dims))
    np.testing.assert_allclose(np.asarray(out_rag),
                               np.asarray(actor_reference(x_rag, params)),
                               rtol=0, atol=ATOL)

    # 3) Larger batch, exact multiple of the tile (tb=256, grid=4).
    x_big = jax.random.normal(k_x3, (1024, state_size), jnp.float32)
    out_big = jax.block_until_ready(actor_forward(x_big, w_slab, b_slab, dims))
    np.testing.assert_allclose(np.asarray(out_big),
                               np.asarray(actor_reference(x_big, params)),
                               rtol=0, atol=ATOL)

    print("KERNEL_OK")
</pallas_src>

<mosaic_0001>
module attributes {stable_mosaic.version = 11 : i64} {
  func.func @actor_kernel(%arg0: i32, %arg1: memref<8x32xf32, #tpu.memory_space<vmem>>, %arg2: memref<128x384xbf16, #tpu.memory_space<vmem>>, %arg3: memref<1x384xf32, #tpu.memory_space<vmem>>, %arg4: memref<8x8xf32, #tpu.memory_space<vmem>>) attributes {dimension_semantics = [#tpu.dimension_semantics<parallel>], iteration_bounds = array<i64: 1>, scalar_prefetch = 0 : i64, scratch_operands = 0 : i64, tpu.core_type = #tpu.core_type<tc>, window_params = [{transform_indices = @transform_0, window_bounds = array<i64: 8, 32>}, {pipeline_mode = #tpu.pipeline_mode<synchronous>, transform_indices = @transform_1, window_bounds = array<i64: 128, 384>}, {pipeline_mode = #tpu.pipeline_mode<synchronous>, transform_indices = @transform_2, window_bounds = array<i64: 1, 384>}, {transform_indices = @transform_3, window_bounds = array<i64: 8, 8>}]} {
    %c0 = arith.constant 0 : index
    %c0_0 = arith.constant 0 : index
    %0 = vector.load %arg1[%c0, %c0_0] : memref<8x32xf32, #tpu.memory_space<vmem>>, vector<8x32xf32>
    %1 = arith.truncf %0 : vector<8x32xf32> to vector<8x32xbf16>
    %c0_1 = arith.constant 0 : index
    %c0_2 = arith.constant 0 : index
    %2 = vector.load %arg2[%c0_1, %c0_2] : memref<128x384xbf16, #tpu.memory_space<vmem>>, vector<32x128xbf16>
    %c0_3 = arith.constant 0 : index
    %c128 = arith.constant 128 : index
    %3 = vector.load %arg2[%c0_3, %c128] : memref<128x384xbf16, #tpu.memory_space<vmem>>, vector<128x128xbf16>
    %c0_4 = arith.constant 0 : index
    %c256 = arith.constant 256 : index
    %4 = vector.load %arg2[%c0_4, %c256] : memref<128x384xbf16, #tpu.memory_space<vmem>>, vector<128x128xbf16>
    %c0_5 = arith.constant 0 : index
    %c0_6 = arith.constant 0 : index
    %5 = vector.load %arg3[%c0_5, %c0_6] : memref<1x384xf32, #tpu.memory_space<vmem>>, vector<1x128xf32>
    %c0_7 = arith.constant 0 : index
    %c128_8 = arith.constant 128 : index
    %6 = vector.load %arg3[%c0_7, %c128_8] : memref<1x384xf32, #tpu.memory_space<vmem>>, vector<1x128xf32>
    %c0_9 = arith.constant 0 : index
    %c256_10 = arith.constant 256 : index
    %7 = vector.load %arg3[%c0_9, %c256_10] : memref<1x384xf32, #tpu.memory_space<vmem>>, vector<1x128xf32>
    %cst = arith.constant dense<0.000000e+00> : vector<8x128xf32>
    %8 = tpu.matmul %1, %2, %cst {dimension_numbers = #tpu.dot_dimension_numbers<[1], [0], [0], [1], [0, 0, 1, 1], [], []>} : vector<8x32xbf16>, vector<32x128xbf16>, vector<8x128xf32> -> vector<8x128xf32>
    %9 = vector.broadcast %5 : vector<1x128xf32> to vector<8x128xf32>
    %10 = arith.addf %8, %9 : vector<8x128xf32>
    %cst_11 = arith.constant 0.00999999977 : f32
    %11 = vector.broadcast %cst_11 : f32 to vector<8x128xf32>
    %12 = arith.mulf %11, %10 : vector<8x128xf32>
    %13 = arith.maximumf %10, %12 : vector<8x128xf32>
    %14 = arith.truncf %13 : vector<8x128xf32> to vector<8x128xbf16>
    %cst_12 = arith.constant dense<0.000000e+00> : vector<8x128xf32>
    %15 = tpu.matmul %14, %3, %cst_12 {dimension_numbers = #tpu.dot_dimension_numbers<[1], [0], [0], [1], [0, 0, 1, 1], [], []>} : vector<8x128xbf16>, vector<128x128xbf16>, vector<8x128xf32> -> vector<8x128xf32>
    %16 = vector.broadcast %6 : vector<1x128xf32> to vector<8x128xf32>
    %17 = arith.addf %15, %16 : vector<8x128xf32>
    %cst_13 = arith.constant 0.00999999977 : f32
    %18 = vector.broadcast %cst_13 : f32 to vector<8x128xf32>
    %19 = arith.mulf %18, %17 : vector<8x128xf32>
    %20 = arith.maximumf %17, %19 : vector<8x128xf32>
    %21 = arith.truncf %20 : vector<8x128xf32> to vector<8x128xbf16>
    %cst_14 = arith.constant dense<0.000000e+00> : vector<8x128xf32>
    %22 = tpu.matmul %21, %4, %cst_14 {dimension_numbers = #tpu.dot_dimension_numbers<[1], [0], [0], [1], [0, 0, 1, 1], [], []>} : vector<8x128xbf16>, vector<128x128xbf16>, vector<8x128xf32> -> vector<8x128xf32>
    %23 = vector.broadcast %7 : vector<1x128xf32> to vector<8x128xf32>
    %24 = arith.addf %22, %23 : vector<8x128xf32>
    %25 = vector.extract_strided_slice %24 {offsets = [0, 0], sizes = [8, 8], strides = [1, 1]} : vector<8x128xf32> to vector<8x8xf32>
    %26 = math.tanh %25 : vector<8x8xf32>
    %c0_15 = arith.constant 0 : index
    %c0_16 = arith.constant 0 : index
    %27 = vector.load %arg4[%c0_15, %c0_16] : memref<8x8xf32, #tpu.memory_space<vmem>>, vector<8x8xf32>
    tpu.vector_store %arg4[%c0_15, %c0_16], %26 {strides = array<i32>} : memref<8x8xf32, #tpu.memory_space<vmem>>, vector<8x8xf32>,
    return
  }
  func.func @transform_0(%arg0: i32) -> (i32, i32) {
    %c0_i32 = arith.constant 0 : i32
    %c0_i32_0 = arith.constant 0 : i32
    return %arg0, %c0_i32 : i32, i32
  }
  func.func @transform_1(%arg0: i32) -> (i32, i32) {
    %c0_i32 = arith.constant 0 : i32
    %c0_i32_0 = arith.constant 0 : i32
    %c0_i32_1 = arith.constant 0 : i32
    return %c0_i32, %c0_i32_0 : i32, i32
  }
  func.func @transform_2(%arg0: i32) -> (i32, i32) {
    %c0_i32 = arith.constant 0 : i32
    %c0_i32_0 = arith.constant 0 : i32
    %c0_i32_1 = arith.constant 0 : i32
    return %c0_i32, %c0_i32_0 : i32, i32
  }
  func.func @transform_3(%arg0: i32) -> (i32, i32) {
    %c0_i32 = arith.constant 0 : i32
    %c0_i32_0 = arith.constant 0 : i32
    return %arg0, %c0_i32 : i32, i32
  }
}

</mosaic_0001>

<llo_original>
// kernel: tpu_custom_call.1
$region0: #{tpu_custom_call.1}
  #allocation0 [shape = 'u32[]', space=smem, size = 0x4, offset = 0x4, fixed_abs, tag = 'smem constant byte address 0x4 - core index']
  #allocation1 [shape = 'u32[144,128]{1,0:T(1,128)}', space=vmem, size = 0x12000, scoped, tag = 'internal scratch']
  %s0 = inlined_call_operand.hbm [shape: f32[8,32], index: 0, kind: input, shape index: {}]
  %s1 = inlined_call_operand.hbm [shape: bf16[128,384], index: 1, kind: input, shape index: {}]
  %s2 = inlined_call_operand.vmem [shape: f32[1,384], index: 2, kind: input, shape index: {}]
  %s3 = inlined_call_operand.hbm [shape: f32[8,8], index: 3, kind: output, shape index: {}]
  %s4 = sld [smem:[#allocation0]]
  $region30: #{tpu_custom_call.1} parent=0
    _
  %s6 = ssub.s32 1, %s4
  %s7 = scalar_select 0, %s6, %s4
  $region1: #{tpu_custom_call.1} parent=0
    #allocation2 [shape = 'u8[4096]{0}', space=vmem, size = 0x1000, scoped, tag = 'input window, operand 0, single buffered']
    #allocation3 [shape = 's32[1]{0}', space=sflag, size = 0x4, scoped, tag = 'scoped memory for tpu_custom_call.1']
    #allocation4 [shape = 's32[1]{0}', space=sflag, size = 0x4, scoped, tag = 'scoped memory for tpu_custom_call.1']
    #allocation5 [shape = 'u8[98304]{0}', space=vmem, size = 0x18000, scoped, tag = 'input window, operand 1, single buffered']
    #allocation6 [shape = 's32[1]{0}', space=sflag, size = 0x4, scoped, tag = 'scoped memory for tpu_custom_call.1']
    #allocation7 [shape = 'u8[4096]{0}', space=vmem, size = 0x1000, scoped, tag = 'output window, operand 0, single buffered']
    %8 = vsyncpa [#allocation3], 0
    %9 = vsyncpa [#allocation6], 0
    %10 = vsyncpa [#allocation4], 0
    // Predicated region
    $region2: #{tpu_custom_call.1} parent=1 // pred_check
      _
    $region3: #{tpu_custom_call.1} parent=1 // pred_check_branch
      %12 = sbr.rel (0) target = $region5
    $region4: #{tpu_custom_call.1} parent=1 // pred_region
      %s14 = ssub.s32 128, 128
      %15 = vsyncadd [#allocation3], %s14
      %s17 = sshll.u32 [#allocation2], 4
      %s18 = int_to_ptr.vmem [resolvable:$true] %s17
      %20 = dma.hbm_to_vmem [thread:$0]  %s0, 128, %s18, [#allocation3]
    $region5: #{tpu_custom_call.1} parent=1 // pred_fallthru
      _
    // Predicated region
    $region6: #{tpu_custom_call.1} parent=1 // pred_check
      _
    $region7: #{tpu_custom_call.1} parent=1 // pred_check_branch
      %22 = sbr.rel (0) target = $region9
    $region8: #{tpu_custom_call.1} parent=1 // pred_region
      %s24 = ssub.s32 3072, 3072
      %25 = vsyncadd [#allocation6], %s24
      %s26 = sshll.u32 [#allocation5], 4
      %s27 = int_to_ptr.vmem [resolvable:$true] %s26
      %32 = dma.hbm_to_vmem [thread:$0]  %s1, 3072, %s27, [#allocation6], 192, 192, 12
    $region9: #{tpu_custom_call.1} parent=1 // pred_fallthru
      _
    // Predicated region
    $region10: #{tpu_custom_call.1} parent=1 // pred_check
      _
    $region11: #{tpu_custom_call.1} parent=1 // pred_check_branch
      %34 = sbr.rel (0) target = $region13
    $region12: #{tpu_custom_call.1} parent=1 // pred_region
      _
    $region13: #{tpu_custom_call.1} parent=1 // pred_fallthru
      _
    // Predicated region
    $region14: #{tpu_custom_call.1} parent=1 // pred_check
      _
    $region15: #{tpu_custom_call.1} parent=1 // pred_check_branch
      %36 = sbr.rel (0) target = $region17
    $region16: #{tpu_custom_call.1} parent=1 // pred_region
      %37 = dma.done [#allocation3], 128
    $region17: #{tpu_custom_call.1} parent=1 // pred_fallthru
      _
    // Predicated region
    $region18: #{tpu_custom_call.1} parent=1 // pred_check
      _
    $region19: #{tpu_custom_call.1} parent=1 // pred_check_branch
      %39 = sbr.rel (0) target = $region21
    $region20: #{tpu_custom_call.1} parent=1 // pred_region
      %40 = dma.done [#allocation6], 3072
    $region21: #{tpu_custom_call.1} parent=1 // pred_fallthru
      _
    %v42 = vld [vmem:[#allocation2] sm:$0xff]
    %v43 = vpack.c.bf16 %v42, %v42
    %v44 = vld [vmem:[#allocation5] sm:$0xf]
    %v45 = vld [vmem:[#allocation5 + $0xc] sm:$0xf]
    %v46 = vld [vmem:[#allocation5 + $0x18] sm:$0xf]
    %v47 = vld [vmem:[#allocation5 + $0x24] sm:$0xf]
    %v48 = vld [vmem:[#allocation5 + $0x4] sm:$0xf]
    %v49 = vld [vmem:[#allocation5 + $0x10] sm:$0xf]
    %v50 = vld [vmem:[#allocation5 + $0x1c] sm:$0xf]
    %v51 = vld [vmem:[#allocation5 + $0x28] sm:$0xf]
    %v52 = vld [vmem:[#allocation5 + $0x34] sm:$0xf]
    %v53 = vld [vmem:[#allocation5 + $0x40] sm:$0xf]
    %v54 = vld [vmem:[#allocation5 + $0x4c] sm:$0xf]
    %v55 = vld [vmem:[#allocation5 + $0x58] sm:$0xf]
    %v56 = vld [vmem:[#allocation5 + $0x64] sm:$0xf]
    %v57 = vld [vmem:[#allocation5 + $0x70] sm:$0xf]
    %v58 = vld [vmem:[#allocation5 + $0x7c] sm:$0xf]
    %v59 = vld [vmem:[#allocation5 + $0x88] sm:$0xf]
    %v60 = vld [vmem:[#allocation5 + $0x94] sm:$0xf]
    %v61 = vld [vmem:[#allocation5 + $0xa0] sm:$0xf]
    %v62 = vld [vmem:[#allocation5 + $0xac] sm:$0xf]
    %v63 = vld [vmem:[#allocation5 + $0xb8] sm:$0xf]
    %v64 = vld [vmem:[#allocation5 + $0x8] sm:$0xf]
    %v65 = vld [vmem:[#allocation5 + $0x14] sm:$0xf]
    %v66 = vld [vmem:[#allocation5 + $0x20] sm:$0xf]
    %v67 = vld [vmem:[#allocation5 + $0x2c] sm:$0xf]
    %v68 = vld [vmem:[#allocation5 + $0x38] sm:$0xf]
    %v69 = vld [vmem:[#allocation5 + $0x44] sm:$0xf]
    %v70 = vld [vmem:[#allocation5 + $0x50] sm:$0xf]
    %v71 = vld [vmem:[#allocation5 + $0x5c] sm:$0xf]
    %v72 = vld [vmem:[#allocation5 + $0x68] sm:$0xf]
    %v73 = vld [vmem:[#allocation5 + $0x74] sm:$0xf]
    %v74 = vld [vmem:[#allocation5 + $0x80] sm:$0xf]
    %v75 = vld [vmem:[#allocation5 + $0x8c] sm:$0xf]
    %v76 = vld [vmem:[#allocation5 + $0x98] sm:$0xf]
    %v77 = vld [vmem:[#allocation5 + $0xa4] sm:$0xf]
    %v78 = vld [vmem:[#allocation5 + $0xb0] sm:$0xf]
    %v79 = vld [vmem:[#allocation5 + $0xbc] sm:$0xf]
    %v80 = vld [vmem:[%s2] sm:$0x1]
    %v81 = vld [vmem:[%s2 + $0x1] sm:$0x1]
    %v82 = vld [vmem:[%s2 + $0x2] sm:$0x1]
    %v84 = vlaneseq
    %v85 = vshrl.u32 %v84, 7
    %v86 = vsub.s32 0, %v85
    %v87 = vrot.slane %v80, %v86
    %v93 = vunpack.c.l.b16 %v44
    %v94 = vunpack.c.l.b16 %v45
    %v95 = vunpack.c.l.b16 %v46
    %v96 = vunpack.c.l.b16 %v47
    %v97 = vpack.c.b16 %v94, %v93
    %v98 = vpack.c.b16 %v96, %v95
    %vm101 = vcmask 261120
    %v103 = vsel %vm101, %v43, 0
    %105 = vmatprep.subr.bf16.mxu0 0
    %106 = vmatpush1.bf16.msra.mxu0 %v97
    %107 = vmatprep.subr.bf16.mxu0 0
    %108 = vmatpush1.bf16.msra.mxu0 %v98
    %109 = vmatprep.subr.bf16.mxu0 0
    %110 = vmatpush1.bf16.msra.mxu0 0
    %111 = vmatprep.subr.bf16.mxu0 0
    %112 = vmatpush1.bf16.msra.mxu0 0
    %113 = vmatprep.subr.bf16.mxu0 0
    %114 = vmatpush1.bf16.msra.mxu0 0
    %115 = vmatprep.subr.bf16.mxu0 0
    %116 = vmatpush1.bf16.msra.mxu0 0
    %117 = vmatprep.subr.bf16.mxu0 0
    %118 = vmatpush1.bf16.msra.mxu0 0
    %119 = vmatprep.subr.bf16.mxu0 0
    %120 = vmatpush1.bf16.msra.mxu0 0
    %121 = vmatprep.subr.bf16.mxu0 0
    %122 = vmatpush1.bf16.msra.mxu0 0
    %123 = vmatprep.subr.bf16.mxu0 0
    %124 = vmatpush1.bf16.msra.mxu0 0
    %125 = vmatprep.subr.bf16.mxu0 0
    %126 = vmatpush1.bf16.msra.mxu0 0
    %127 = vmatprep.subr.bf16.mxu0 0
    %128 = vmatpush1.bf16.msra.mxu0 0
    %129 = vmatprep.subr.bf16.mxu0 0
    %130 = vmatpush1.bf16.msra.mxu0 0
    %131 = vmatprep.subr.bf16.mxu0 0
    %132 = vmatpush1.bf16.msra.mxu0 0
    %133 = vmatprep.subr.bf16.mxu0 0
    %134 = vmatpush1.bf16.msra.mxu0 0
    %135 = vmatprep.subr.bf16.mxu0 0
    %136 = vmatpush1.bf16.msra.mxu0 0
    %137 = vmatprep.mubr.bf16.mxu0 0
    %138 = vmatmul.mubr.bf16.gmra.mrb[0].mxu0 %v103
    %v139 = vpop.f32.mrb[0].mxu0
    %v140 = vadd.f32 %v87, %v139
    %v141 = vpop.f32.mrb[0].mxu0
    %v142 = vpop.f32.mrb[0].mxu0
    %v143 = vpop.f32.mrb[0].mxu0
    %144 = vdwg.mxu0
    %v145 = vmul.f32 %v140, 0.01
    %v146 = vmax.f32 %v140, %v145
    %v147 = vpack.c.bf16 %v146, %v146
    %v149 = vlaneseq
    %v150 = vshrl.u32 %v149, 7
    %v151 = vsub.s32 0, %v150
    %v152 = vrot.slane %v81, %v151
    %v170 = vunpack.c.l.b16 %v48
    %v171 = vunpack.c.l.b16 %v49
    %v172 = vunpack.c.l.b16 %v50
    %v173 = vunpack.c.l.b16 %v51
    %v174 = vunpack.c.l.b16 %v52
    %v175 = vunpack.c.l.b16 %v53
    %v176 = vunpack.c.l.b16 %v54
    %v177 = vunpack.c.l.b16 %v55
    %v178 = vunpack.c.l.b16 %v56
    %v179 = vunpack.c.l.b16 %v57
    %v180 = vunpack.c.l.b16 %v58
    %v181 = vunpack.c.l.b16 %v59
    %v182 = vunpack.c.l.b16 %v60
    %v183 = vunpack.c.l.b16 %v61
    %v184 = vunpack.c.l.b16 %v62
    %v185 = vunpack.c.l.b16 %v63
    %v186 = vpack.c.b16 %v171, %v170
    %v187 = vpack.c.b16 %v173, %v172
    %v188 = vpack.c.b16 %v175, %v174
    %v189 = vpack.c.b16 %v177, %v176
    %v190 = vpack.c.b16 %v179, %v178
    %v191 = vpack.c.b16 %v181, %v180
    %v192 = vpack.c.b16 %v183, %v182
    %v193 = vpack.c.b16 %v185, %v184
    %202 = vmatprep.subr.bf16.mxu0 0
    %203 = vmatpush1.bf16.msra.mxu0 %v186
    %204 = vmatprep.subr.bf16.mxu0 0
    %205 = vmatpush1.bf16.msra.mxu0 %v187
    %206 = vmatprep.subr.bf16.mxu0 0
    %207 = vmatpush1.bf16.msra.mxu0 %v188
    %208 = vmatprep.subr.bf16.mxu0 0
    %209 = vmatpush1.bf16.msra.mxu0 %v189
    %210 = vmatprep.subr.bf16.mxu0 0
    %211 = vmatpush1.bf16.msra.mxu0 %v190
    %212 = vmatprep.subr.bf16.mxu0 0
    %213 = vmatpush1.bf16.msra.mxu0 %v191
    %214 = vmatprep.subr.bf16.mxu0 0
    %215 = vmatpush1.bf16.msra.mxu0 %v192
    %216 = vmatprep.subr.bf16.mxu0 0
    %217 = vmatpush1.bf16.msra.mxu0 %v193
    %218 = vmatprep.subr.bf16.mxu0 0
    %219 = vmatpush1.bf16.msra.mxu0 0
    %220 = vmatprep.subr.bf16.mxu0 0
    %221 = vmatpush1.bf16.msra.mxu0 0
    %222 = vmatprep.subr.bf16.mxu0 0
    %223 = vmatpush1.bf16.msra.mxu0 0
    %224 = vmatprep.subr.bf16.mxu0 0
    %225 = vmatpush1.bf16.msra.mxu0 0
    %226 = vmatprep.subr.bf16.mxu0 0
    %227 = vmatpush1.bf16.msra.mxu0 0
    %228 = vmatprep.subr.bf16.mxu0 0
    %229 = vmatpush1.bf16.msra.mxu0 0
    %230 = vmatprep.subr.bf16.mxu0 0
    %231 = vmatpush1.bf16.msra.mxu0 0
    %232 = vmatprep.subr.bf16.mxu0 0
    %233 = vmatpush1.bf16.msra.mxu0 0
    %234 = vmatprep.mubr.bf16.mxu0 0
    %235 = vmatmul.mubr.bf16.gmra.mrb[0].mxu0 %v147
    %v236 = vpop.f32.mrb[0].mxu0
    %v237 = vadd.f32 %v152, %v236
    %v238 = vpop.f32.mrb[0].mxu0
    %v239 = vpop.f32.mrb[0].mxu0
    %v240 = vpop.f32.mrb[0].mxu0
    %241 = vdwg.mxu0
    %v242 = vmul.f32 %v237, 0.01
    %v243 = vmax.f32 %v237, %v242
    %v244 = vpack.c.bf16 %v243, %v243
    %v246 = vlaneseq
    %v247 = vshrl.u32 %v246, 7
    %v248 = vsub.s32 0, %v247
    %v249 = vrot.slane %v82, %v248
    %v267 = vunpack.c.l.b16 %v64
    %v268 = vunpack.c.l.b16 %v65
    %v269 = vunpack.c.l.b16 %v66
    %v270 = vunpack.c.l.b16 %v67
    %v271 = vunpack.c.l.b16 %v68
    %v272 = vunpack.c.l.b16 %v69
    %v273 = vunpack.c.l.b16 %v70
    %v274 = vunpack.c.l.b16 %v71
    %v275 = vunpack.c.l.b16 %v72
    %v276 = vunpack.c.l.b16 %v73
    %v277 = vunpack.c.l.b16 %v74
    %v278 = vunpack.c.l.b16 %v75
    %v279 = vunpack.c.l.b16 %v76
    %v280 = vunpack.c.l.b16 %v77
    %v281 = vunpack.c.l.b16 %v78
    %v282 = vunpack.c.l.b16 %v79
    %v283 = vpack.c.b16 %v268, %v267
    %v284 = vpack.c.b16 %v270, %v269
    %v285 = vpack.c.b16 %v272, %v271
    %v286 = vpack.c.b16 %v274, %v273
    %v287 = vpack.c.b16 %v276, %v275
    %v288 = vpack.c.b16 %v278, %v277
    %v289 = vpack.c.b16 %v280, %v279
    %v290 = vpack.c.b16 %v282, %v281
    %299 = vmatprep.subr.bf16.mxu0 0
    %300 = vmatpush1.bf16.msra.mxu0 %v283
    %301 = vmatprep.subr.bf16.mxu0 0
    %302 = vmatpush1.bf16.msra.mxu0 %v284
    %303 = vmatprep.subr.bf16.mxu0 0
    %304 = vmatpush1.bf16.msra.mxu0 %v285
    %305 = vmatprep.subr.bf16.mxu0 0
    %306 = vmatpush1.bf16.msra.mxu0 %v286
    %307 = vmatprep.subr.bf16.mxu0 0
    %308 = vmatpush1.bf16.msra.mxu0 %v287
    %309 = vmatprep.subr.bf16.mxu0 0
    %310 = vmatpush1.bf16.msra.mxu0 %v288
    %311 = vmatprep.subr.bf16.mxu0 0
    %312 = vmatpush1.bf16.msra.mxu0 %v289
    %313 = vmatprep.subr.bf16.mxu0 0
    %314 = vmatpush1.bf16.msra.mxu0 %v290
    %315 = vmatprep.subr.bf16.mxu0 0
    %316 = vmatpush1.bf16.msra.mxu0 0
    %317 = vmatprep.subr.bf16.mxu0 0
    %318 = vmatpush1.bf16.msra.mxu0 0
    %319 = vmatprep.subr.bf16.mxu0 0
    %320 = vmatpush1.bf16.msra.mxu0 0
    %321 = vmatprep.subr.bf16.mxu0 0
    %322 = vmatpush1.bf16.msra.mxu0 0
    %323 = vmatprep.subr.bf16.mxu0 0
    %324 = vmatpush1.bf16.msra.mxu0 0
    %325 = vmatprep.subr.bf16.mxu0 0
    %326 = vmatpush1.bf16.msra.mxu0 0
    %327 = vmatprep.subr.bf16.mxu0 0
    %328 = vmatpush1.bf16.msra.mxu0 0
    %329 = vmatprep.subr.bf16.mxu0 0
    %330 = vmatpush1.bf16.msra.mxu0 0
    %331 = vmatprep.mubr.bf16.mxu0 0
    %332 = vmatmul.mubr.bf16.gmra.mrb[0].mxu0 %v244
    %v333 = vpop.f32.mrb[0].mxu0
    %v334 = vadd.f32 %v249, %v333
    %v335 = vpop.f32.mrb[0].mxu0
    %v336 = vpop.f32.mrb[0].mxu0
    %v337 = vpop.f32.mrb[0].mxu0
    %338 = vdwg.mxu0
    %v339 = vtanh.pop %v334
    %vm340 = vcmask 64512
    %341 = vst.msk [vmem:[#allocation7] sm:$0xff] %vm340, %v339
    // Predicated region
    $region22: #{tpu_custom_call.1} parent=1 // pred_check
      _
    $region23: #{tpu_custom_call.1} parent=1 // pred_check_branch
      %343 = sbr.rel (0) target = $region25
    $region24: #{tpu_custom_call.1} parent=1 // pred_region
      %s345 = ssub.s32 128, 128
      %346 = vsyncadd [#allocation4], %s345
      %s348 = sshll.u32 [#allocation7], 4
      %s349 = int_to_ptr.vmem [resolvable:$true] %s348
      %351 = dma.vmem_to_hbm [thread:$0]  %s349, 128, %s3, [#allocation4]
    $region25: #{tpu_custom_call.1} parent=1 // pred_fallthru
      _
    // Predicated region
    $region26: #{tpu_custom_call.1} parent=1 // pred_check
      _
    $region27: #{tpu_custom_call.1} parent=1 // pred_check_branch
      %353 = sbr.rel (0) target = $region29
    $region28: #{tpu_custom_call.1} parent=1 // pred_region
      %354 = dma.done [#allocation4], 128
    $region29: #{tpu_custom_call.1} parent=1 // pred_fallthru
      _
    %355 = vsyncpa [#allocation3], 1
    %356 = vsyncpa [#allocation6], 1
    %357 = vsyncpa [#allocation4], 1

</llo_original>
